<compile_context>
chip_gen: v6e
topology: v6e:2x2x1
jax: 0.10.0
libtpu: 0.0.40
codegen_flags: <defaults>
</compile_context>

<pallas_src>
import functools

import jax
import jax.numpy as jnp
from jax.experimental import pallas as pl
from jax.experimental.pallas import tpu as pltpu

_VMEM_LIMIT_BYTES = 48 * 1024 * 1024


# ---------------------------------------------------------------------------
# Row-tiled linear kernel:  y = x @ w + b  (optional tanh).  The output can be
# split along the feature dim into several arrays (used to emit the fwd / rev
# gate pre-activations as two separate, contiguously-DMA-able buffers).
# ---------------------------------------------------------------------------
def _linear_kernel(x_ref, w_ref, b_ref, *o_refs, activation):
    y = jnp.dot(x_ref[...], w_ref[...], preferred_element_type=jnp.float32)
    y = y + b_ref[...]
    if activation == "tanh":
        y = jnp.tanh(y)
    off = 0
    for o_ref in o_refs:
        d = o_ref.shape[-1]
        o_ref[...] = y[:, off:off + d].astype(o_ref.dtype)
        off += d


def fused_linear(x, w, b, *, activation=None, out_splits=None,
                 out_dtype=jnp.float32, row_tile=512):
    """y = x @ w + b, row-tiled over N; returns one array or a tuple (split cols)."""
    N, din = x.shape
    dout = w.shape[1]
    splits = (dout,) if out_splits is None else tuple(out_splits)
    assert sum(splits) == dout

    if N <= row_tile:
        tm, Np = N, N
    else:
        tm = row_tile
        Np = pl.cdiv(N, tm) * tm
        if Np != N:
            x = jnp.pad(x, ((0, Np - N), (0, 0)))

    out_shape = tuple(jax.ShapeDtypeStruct((Np, d), out_dtype) for d in splits)
    out_specs = tuple(pl.BlockSpec((tm, d), lambda i: (i, 0)) for d in splits)

    res = pl.pallas_call(
        functools.partial(_linear_kernel, activation=activation),
        grid=(Np // tm,),
        in_specs=[pl.BlockSpec((tm, din), lambda i: (i, 0)),
                  pl.BlockSpec((din, dout), lambda i: (0, 0)),   # weights resident
                  pl.BlockSpec((1, dout), lambda i: (0, 0))],
        out_shape=out_shape,
        out_specs=out_specs,
        compiler_params=pltpu.CompilerParams(
            dimension_semantics=("parallel",),
            vmem_limit_bytes=_VMEM_LIMIT_BYTES),
    )(x, w, b)
    if not isinstance(res, (tuple, list)):
        res = (res,)
    res = tuple(o if Np == N else o[:N] for o in res)
    return res[0] if out_splits is None else res


# ---------------------------------------------------------------------------
# Bidirectional GRU: both directions, whole time recurrence inside one kernel,
# gates streamed HBM -> VMEM in time chunks with double-buffered DMA.
# ---------------------------------------------------------------------------
def _sigmoid(x):
    # exp (EUP) + reciprocal; pl.reciprocal(approx=True) is cheaper still but
    # drifts past the 1e-4 validation tolerance through the recurrence.
    return pl.reciprocal(1.0 + jnp.exp(-x))


def _bigru_kernel(gf_hbm, gr_hbm, whh_ref, bhh_ref,            # inputs
                  lat_hbm, hid_ref,                             # outputs
                  gf_buf, gr_buf, latf_buf, latr_buf,           # VMEM scratch
                  in_sem, out_sem,                              # DMA semaphores
                  *, T, B, H, CT):
    NC = T // CT                       # number of time chunks (static)
    whh = whh_ref[...]                 # (2H, 6H) block-diagonal recurrent weights
    bhh = bhh_ref[...]                 # (1, 6H)  [b_hh_fwd | b_hh_rev]
    cdt = whh.dtype

    # --- manual double-buffered DMA helpers --------------------------------
    def gates_start(c, slot):
        pltpu.make_async_copy(gf_hbm.at[pl.ds(c * CT, CT)], gf_buf.at[slot],
                              in_sem.at[0, slot]).start()
        pltpu.make_async_copy(gr_hbm.at[pl.ds(T - (c + 1) * CT, CT)], gr_buf.at[slot],
                              in_sem.at[1, slot]).start()

    def gates_wait(slot):
        pltpu.make_async_copy(gf_hbm.at[pl.ds(0, CT)], gf_buf.at[slot],
                              in_sem.at[0, slot]).wait()
        pltpu.make_async_copy(gr_hbm.at[pl.ds(0, CT)], gr_buf.at[slot],
                              in_sem.at[1, slot]).wait()

    def lat_start(c, slot):
        pltpu.make_async_copy(latf_buf.at[slot],
                              lat_hbm.at[pl.ds(c * CT, CT), :, 0, :],
                              out_sem.at[0, slot]).start()
        pltpu.make_async_copy(latr_buf.at[slot],
                              lat_hbm.at[pl.ds(T - (c + 1) * CT, CT), :, 1, :],
                              out_sem.at[1, slot]).start()

    def lat_wait(slot):
        pltpu.make_async_copy(latf_buf.at[slot],
                              lat_hbm.at[pl.ds(0, CT), :, 0, :],
                              out_sem.at[0, slot]).wait()
        pltpu.make_async_copy(latr_buf.at[slot],
                              lat_hbm.at[pl.ds(0, CT), :, 1, :],
                              out_sem.at[1, slot]).wait()

    gates_start(0, 0)                  # prime the first gate chunk

    def gru_step(i, carry, slot):
        h_f, h_r = carry
        g_f = gf_buf[slot, i].astype(jnp.float32)              # (B,3H)  time c*CT+i
        g_r = gr_buf[slot, CT - 1 - i].astype(jnp.float32)     # (B,3H)  time T-1-(c*CT+i)
        # one fused (B,2H)@(2H,6H) MXU push covering both directions
        h_cat = jnp.concatenate([h_f, h_r], axis=-1).astype(cdt)
        gh = jnp.dot(h_cat, whh, preferred_element_type=jnp.float32) + bhh
        # forward cell (PyTorch gate order r, z, n)
        r_f = _sigmoid(g_f[:, 0:H] + gh[:, 0:H])
        z_f = _sigmoid(g_f[:, H:2 * H] + gh[:, H:2 * H])
        n_f = jnp.tanh(g_f[:, 2 * H:3 * H] + r_f * gh[:, 2 * H:3 * H])
        h_f = n_f + z_f * (h_f - n_f)
        # reverse cell
        r_r = _sigmoid(g_r[:, 0:H] + gh[:, 3 * H:4 * H])
        z_r = _sigmoid(g_r[:, H:2 * H] + gh[:, 4 * H:5 * H])
        n_r = jnp.tanh(g_r[:, 2 * H:3 * H] + r_r * gh[:, 5 * H:6 * H])
        h_r = n_r + z_r * (h_r - n_r)
        latf_buf[slot, i] = h_f.astype(latf_buf.dtype)
        latr_buf[slot, CT - 1 - i] = h_r.astype(latr_buf.dtype)
        return h_f, h_r

    def chunk_body(c, carry):
        slot = c % 2
        gates_wait(slot)

        @pl.when(c + 1 < NC)
        def _():                       # prefetch next gate chunk into the other slot
            gates_start(c + 1, 1 - slot)

        @pl.when(c >= 2)
        def _():                       # latent slot reused -> drain its old write-back
            lat_wait(slot)

        carry = jax.lax.fori_loop(0, CT, lambda i, cr: gru_step(i, cr, slot),
                                  carry, unroll=min(4, CT))

        lat_start(c, slot)             # write this chunk's latents back to HBM
        return carry

    h0 = jnp.zeros((B, H), jnp.float32)
    h_f, h_r = jax.lax.fori_loop(0, NC, chunk_body, (h0, h0))

    # drain the remaining latent write-backs (NC is static Python int)
    if NC >= 2:
        lat_wait((NC - 2) % 2)
    lat_wait((NC - 1) % 2)

    hid_ref[:, 0:H] = h_f
    hid_ref[:, H:2 * H] = h_r


def _pick_time_chunk(T, B, H, itemsize, budget_bytes=8 << 20):
    """Largest divisor of T whose double-buffered gate+latent VMEM fits the budget."""
    per_step = 2 * B * (3 * H + 3 * H + H + H) * itemsize   # 2 slots x (gates + latents)
    max_ct = max(1, budget_bytes // max(per_step, 1))
    ct = 1
    for d in range(1, T + 1):
        if T % d == 0 and d <= max_ct:
            ct = d
    return ct


def bigru(gates_f, gates_r, whh_bd, bhh, *, T, B, H, lat_dtype, chunk_t):
    full = lambda s: pl.BlockSpec(s, lambda i: (0,) * len(s))
    CT = chunk_t
    return pl.pallas_call(
        functools.partial(_bigru_kernel, T=T, B=B, H=H, CT=CT),
        grid=(1,),
        in_specs=[pl.BlockSpec(memory_space=pl.ANY),      # fwd gates stay in HBM
                  pl.BlockSpec(memory_space=pl.ANY),      # rev gates stay in HBM
                  full(whh_bd.shape),
                  full(bhh.shape)],
        out_shape=(jax.ShapeDtypeStruct((T, B, 2, H), lat_dtype),   # combined latent
                   jax.ShapeDtypeStruct((B, 2 * H), jnp.float32)),  # final [h_f | h_r]
        out_specs=(pl.BlockSpec(memory_space=pl.ANY),
                   full((B, 2 * H))),
        scratch_shapes=[
            pltpu.VMEM((2, CT, B, 3 * H), gates_f.dtype),   # fwd gate double buffer
            pltpu.VMEM((2, CT, B, 3 * H), gates_r.dtype),   # rev gate double buffer
            pltpu.VMEM((2, CT, B, H), lat_dtype),           # fwd latent chunk buffer
            pltpu.VMEM((2, CT, B, H), lat_dtype),           # rev latent chunk buffer
            pltpu.SemaphoreType.DMA((2, 2)),                # gate in-DMAs  [dir, slot]
            pltpu.SemaphoreType.DMA((2, 2)),                # latent out-DMAs [dir, slot]
        ],
        compiler_params=pltpu.CompilerParams(
            dimension_semantics=("arbitrary",),
            vmem_limit_bytes=_VMEM_LIMIT_BYTES),
    )(gates_f, gates_r, whh_bd, bhh)


# ---------------------------------------------------------------------------
# One-time parameter fusion / pre-transposition (PyTorch layout -> kernel layout)
# ---------------------------------------------------------------------------
def prepare_params(params, hid_dim, num_layers=2, bidirectional=True,
                   compute_dtype=jnp.float32):
    assert bidirectional, "this Pallas implementation covers the bidirectional path"
    H = hid_dim
    f32 = lambda a: jnp.asarray(a, jnp.float32)
    fp = {"num_layers": num_layers, "compute_dtype": compute_dtype}

    fp["emb_wt"] = f32(params["emb_w"]).T                         # (in, E)
    fp["emb_b"] = f32(params["emb_b"]).reshape(1, -1)

    for layer in range(num_layers):
        w_ih = jnp.concatenate([f32(params[f"w_ih_l{layer}"]),
                                f32(params[f"w_ih_l{layer}_reverse"])], axis=0)  # (6H, in)
        fp[f"wih_t_l{layer}"] = w_ih.T.astype(compute_dtype)                     # (in, 6H)
        fp[f"bih_l{layer}"] = jnp.concatenate(
            [f32(params[f"b_ih_l{layer}"]),
             f32(params[f"b_ih_l{layer}_reverse"])]).reshape(1, -1)

        wf = f32(params[f"w_hh_l{layer}"]).T                      # (H, 3H)
        wr = f32(params[f"w_hh_l{layer}_reverse"]).T
        z = jnp.zeros((H, 3 * H), jnp.float32)
        whh_bd = jnp.concatenate([jnp.concatenate([wf, z], axis=1),
                                  jnp.concatenate([z, wr], axis=1)], axis=0)     # (2H, 6H)
        fp[f"whh_l{layer}"] = whh_bd.astype(compute_dtype)
        fp[f"bhh_l{layer}"] = jnp.concatenate(
            [f32(params[f"b_hh_l{layer}"]),
             f32(params[f"b_hh_l{layer}_reverse"])]).reshape(1, -1)

    fp["fc_wt"] = f32(params["fc_w"]).T                           # (2H, H)
    fp["fc_b"] = f32(params["fc_b"]).reshape(1, -1)
    return fp


# ---------------------------------------------------------------------------
# Encoder forward (hot-path compute in Pallas; only cheap reshapes in JAX)
# ---------------------------------------------------------------------------
def encoder_forward(fp, x, *, hid_dim):
    B, T, Fin = x.shape
    H = hid_dim
    num_layers = fp["num_layers"]
    cdt = fp["compute_dtype"]

    # single transpose to time-major at the boundary; everything stays time-major
    x_tm = jnp.transpose(jnp.asarray(x, jnp.float32), (1, 0, 2)).reshape(T * B, Fin)

    embed = fused_linear(x_tm, fp["emb_wt"], fp["emb_b"], out_dtype=cdt)   # (T*B, E)
    # dropout after embedding: identity (eval mode)

    layer_in = embed
    lat = hid = None
    chunk_t = _pick_time_chunk(T, B, H, jnp.dtype(cdt).itemsize)
    for layer in range(num_layers):
        gates_f, gates_r = fused_linear(
            layer_in, fp[f"wih_t_l{layer}"], fp[f"bih_l{layer}"],
            out_splits=(3 * H, 3 * H), out_dtype=cdt)
        gates_f = gates_f.reshape(T, B, 3 * H)
        gates_r = gates_r.reshape(T, B, 3 * H)
        lat, hid = bigru(gates_f, gates_r, fp[f"whh_l{layer}"], fp[f"bhh_l{layer}"],
                         T=T, B=B, H=H, lat_dtype=cdt, chunk_t=chunk_t)
        # lat: (T, B, 2, H) with fwd in [..., 0, :] and rev in [..., 1, :]
        layer_in = lat.reshape(T * B, 2 * H)    # free reshape -> combined features
        # inter-layer GRU dropout: identity (eval mode)

    latent = jnp.transpose(lat.reshape(T, B, 2 * H), (1, 0, 2))   # (B, T, 2H)
    hidden = fused_linear(hid, fp["fc_wt"], fp["fc_b"], activation="tanh")  # (B, H)
    return latent.astype(jnp.float32), hidden


# ---------------------------------------------------------------------------
# Deterministic parameter construction (synthetic weights, PyTorch layout)
# ---------------------------------------------------------------------------
def make_params(key, input_dim, embed_dim, hid_dim, num_layers=2, bidirectional=True):
    num_dirs = 2 if bidirectional else 1
    params = {}
    keys = iter(jax.random.split(key, 64))

    def rnd(shape, scale=0.1):
        return jax.random.normal(next(keys), shape, jnp.float32) * scale

    params["emb_w"] = rnd((embed_dim, input_dim))
    params["emb_b"] = rnd((embed_dim,))

    for layer in range(num_layers):
        in_size = embed_dim if layer == 0 else hid_dim * num_dirs
        for direction in range(num_dirs):
            sfx = "_reverse" if direction == 1 else ""
            params[f"w_ih_l{layer}{sfx}"] = rnd((3 * hid_dim, in_size))
            params[f"w_hh_l{layer}{sfx}"] = rnd((3 * hid_dim, hid_dim))
            params[f"b_ih_l{layer}{sfx}"] = rnd((3 * hid_dim,))
            params[f"b_hh_l{layer}{sfx}"] = rnd((3 * hid_dim,))

    fc_in = hid_dim * 2 if bidirectional else hid_dim
    params["fc_w"] = rnd((hid_dim, fc_in))
    params["fc_b"] = rnd((hid_dim,))
    return params


# ---------------------------------------------------------------------------
# Pure-JAX reference (for validation)
# ---------------------------------------------------------------------------
def encoder_forward_ref(params, x, *, hid_dim, num_layers=2, bidirectional=True):
    B, T, _ = x.shape
    H = hid_dim
    num_dirs = 2 if bidirectional else 1

    def lin(v, w, b):
        return v @ w.T + b

    embed = lin(x, params["emb_w"], params["emb_b"])
    layer_in = embed
    final_h = []
    for layer in range(num_layers):
        outs = []
        for direction in range(num_dirs):
            sfx = "_reverse" if direction == 1 else ""
            w_ih, w_hh = params[f"w_ih_l{layer}{sfx}"], params[f"w_hh_l{layer}{sfx}"]
            b_ih, b_hh = params[f"b_ih_l{layer}{sfx}"], params[f"b_hh_l{layer}{sfx}"]
            xin = layer_in if direction == 0 else jnp.flip(layer_in, axis=1)

            def step(h, xt):
                gi = xt @ w_ih.T + b_ih
                gh = h @ w_hh.T + b_hh
                r = jax.nn.sigmoid(gi[:, :H] + gh[:, :H])
                z = jax.nn.sigmoid(gi[:, H:2 * H] + gh[:, H:2 * H])
                n = jnp.tanh(gi[:, 2 * H:] + r * gh[:, 2 * H:])
                h_new = (1 - z) * n + z * h
                return h_new, h_new

            h0 = jnp.zeros((B, H), jnp.float32)
            hT, lat = jax.lax.scan(step, h0, jnp.transpose(xin, (1, 0, 2)))
            lat = jnp.transpose(lat, (1, 0, 2))
            if direction == 1:
                lat = jnp.flip(lat, axis=1)
            outs.append(lat)
            final_h.append(hT)
        layer_in = jnp.concatenate(outs, axis=-1)
    hidden = jnp.concatenate([final_h[-2], final_h[-1]], axis=1) if bidirectional else final_h[-1]
    hidden = jnp.tanh(lin(hidden, params["fc_w"], params["fc_b"]))
    return layer_in, hidden


# ---------------------------------------------------------------------------
if __name__ == "__main__":
    input_dim, embed_dim, hid_dim, output_dim = 8, 16, 32, 16
    B, T = 2, 8

    key = jax.random.PRNGKey(0)
    pkey, xkey = jax.random.split(key)
    params = make_params(pkey, input_dim, embed_dim, hid_dim)
    x = jax.random.normal(xkey, (B, T, input_dim), jnp.float32)

    lat_expect, hid_expect = encoder_forward_ref(params, x, hid_dim=hid_dim)

    # f32 path: tight check against the pure-JAX reference
    fp32 = prepare_params(params, hid_dim, compute_dtype=jnp.float32)
    latent, hidden = encoder_forward(fp32, x, hid_dim=hid_dim)
    latent, hidden = jax.block_until_ready((latent, hidden))
    assert latent.shape == (B, T, 2 * hid_dim)
    assert hidden.shape == (B, hid_dim)
    assert jnp.allclose(latent, lat_expect, atol=1e-4, rtol=1e-4)
    assert jnp.allclose(hidden, hid_expect, atol=1e-4, rtol=1e-4)

    # bf16 gates/weights/latents (halves HBM traffic, bf16 MXU); coarse sanity check
    fpbf = prepare_params(params, hid_dim, compute_dtype=jnp.bfloat16)
    lat_bf, hid_bf = encoder_forward(fpbf, x, hid_dim=hid_dim)
    lat_bf, hid_bf = jax.block_until_ready((lat_bf, hid_bf))
    assert lat_bf.shape == (B, T, 2 * hid_dim) and hid_bf.shape == (B, hid_dim)
    assert bool(jnp.all(jnp.isfinite(lat_bf))) and bool(jnp.all(jnp.isfinite(hid_bf)))
    assert float(jnp.max(jnp.abs(lat_bf - lat_expect))) < 1e-1

    print("KERNEL_OK")
</pallas_src>

<mosaic_0001>
module attributes {stable_mosaic.version = 11 : i64} {
  func.func @_linear_kernel(%arg0: i32, %arg1: memref<16x8xf32, #tpu.memory_space<vmem>>, %arg2: memref<8x16xf32, #tpu.memory_space<vmem>>, %arg3: memref<1x16xf32, #tpu.memory_space<vmem>>, %arg4: memref<16x16xf32, #tpu.memory_space<vmem>>) attributes {dimension_semantics = [#tpu.dimension_semantics<parallel>], iteration_bounds = array<i64: 1>, scalar_prefetch = 0 : i64, scratch_operands = 0 : i64, tpu.core_type = #tpu.core_type<tc>, window_params = [{transform_indices = @transform_0, window_bounds = array<i64: 16, 8>}, {pipeline_mode = #tpu.pipeline_mode<synchronous>, transform_indices = @transform_1, window_bounds = array<i64: 8, 16>}, {pipeline_mode = #tpu.pipeline_mode<synchronous>, transform_indices = @transform_2, window_bounds = array<i64: 1, 16>}, {transform_indices = @transform_3, window_bounds = array<i64: 16, 16>}]} {
    %c0 = arith.constant 0 : index
    %c0_0 = arith.constant 0 : index
    %0 = vector.load %arg1[%c0, %c0_0] : memref<16x8xf32, #tpu.memory_space<vmem>>, vector<16x8xf32>
    %c0_1 = arith.constant 0 : index
    %c0_2 = arith.constant 0 : index
    %1 = vector.load %arg2[%c0_1, %c0_2] : memref<8x16xf32, #tpu.memory_space<vmem>>, vector<8x16xf32>
    %cst = arith.constant dense<0.000000e+00> : vector<16x16xf32>
    %2 = tpu.matmul %0, %1, %cst {dimension_numbers = #tpu.dot_dimension_numbers<[1], [0], [0], [1], [0, 0, 1, 1], [], []>} : vector<16x8xf32>, vector<8x16xf32>, vector<16x16xf32> -> vector<16x16xf32>
    %c0_3 = arith.constant 0 : index
    %c0_4 = arith.constant 0 : index
    %3 = vector.load %arg3[%c0_3, %c0_4] : memref<1x16xf32, #tpu.memory_space<vmem>>, vector<1x16xf32>
    %4 = vector.broadcast %3 : vector<1x16xf32> to vector<16x16xf32>
    %5 = arith.addf %2, %4 : vector<16x16xf32>
    %c0_5 = arith.constant 0 : index
    %c0_6 = arith.constant 0 : index
    %6 = vector.load %arg4[%c0_5, %c0_6] : memref<16x16xf32, #tpu.memory_space<vmem>>, vector<16x16xf32>
    tpu.vector_store %arg4[%c0_5, %c0_6], %5 {strides = array<i32>} : memref<16x16xf32, #tpu.memory_space<vmem>>, vector<16x16xf32>,
    return
  }
  func.func @transform_0(%arg0: i32) -> (i32, i32) {
    %c0_i32 = arith.constant 0 : i32
    %c0_i32_0 = arith.constant 0 : i32
    return %arg0, %c0_i32 : i32, i32
  }
  func.func @transform_1(%arg0: i32) -> (i32, i32) {
    %c0_i32 = arith.constant 0 : i32
    %c0_i32_0 = arith.constant 0 : i32
    %c0_i32_1 = arith.constant 0 : i32
    return %c0_i32, %c0_i32_0 : i32, i32
  }
  func.func @transform_2(%arg0: i32) -> (i32, i32) {
    %c0_i32 = arith.constant 0 : i32
    %c0_i32_0 = arith.constant 0 : i32
    %c0_i32_1 = arith.constant 0 : i32
    return %c0_i32, %c0_i32_0 : i32, i32
  }
  func.func @transform_3(%arg0: i32) -> (i32, i32) {
    %c0_i32 = arith.constant 0 : i32
    %c0_i32_0 = arith.constant 0 : i32
    return %arg0, %c0_i32 : i32, i32
  }
}

</mosaic_0001>

<llo_original>
// kernel: tpu_custom_call.1
$region0: #{tpu_custom_call.1}
  #allocation0 [shape = 'u32[]', space=smem, size = 0x4, offset = 0x4, fixed_abs, tag = 'smem constant byte address 0x4 - core index']
  #allocation1 [shape = 'u32[144,128]{1,0:T(1,128)}', space=vmem, size = 0x12000, scoped, tag = 'internal scratch']
  %s0 = inlined_call_operand.vmem [shape: f32[16,8], index: 0, kind: input, shape index: {}]
  %s1 = inlined_call_operand.vmem [shape: f32[8,16], index: 1, kind: input, shape index: {}]
  %s2 = inlined_call_operand.vmem [shape: f32[1,16], index: 2, kind: input, shape index: {}]
  %s3 = inlined_call_operand.hbm [shape: f32[16,16], index: 3, kind: output, shape index: {}]
  %s4 = sld [smem:[#allocation0]]
  $region22: #{tpu_custom_call.1} parent=0
    _
  %s6 = ssub.s32 1, %s4
  %s7 = scalar_select 0, %s6, %s4
  $region1: #{tpu_custom_call.1} parent=0
    #allocation2 [shape = 'u8[8192]{0}', space=vmem, size = 0x2000, scoped, tag = 'output window, operand 0, single buffered']
    #allocation3 [shape = 's32[1]{0}', space=sflag, size = 0x4, scoped, tag = 'scoped memory for tpu_custom_call.1']
    %8 = vsyncpa [#allocation3], 0
    // Predicated region
    $region2: #{tpu_custom_call.1} parent=1 // pred_check
      _
    $region3: #{tpu_custom_call.1} parent=1 // pred_check_branch
      %10 = sbr.rel (0) target = $region5
    $region4: #{tpu_custom_call.1} parent=1 // pred_region
      _
    $region5: #{tpu_custom_call.1} parent=1 // pred_fallthru
      _
    // Predicated region
    $region6: #{tpu_custom_call.1} parent=1 // pred_check
      _
    $region7: #{tpu_custom_call.1} parent=1 // pred_check_branch
      %12 = sbr.rel (0) target = $region9
    $region8: #{tpu_custom_call.1} parent=1 // pred_region
      _
    $region9: #{tpu_custom_call.1} parent=1 // pred_fallthru
      _
    // Predicated region
    $region10: #{tpu_custom_call.1} parent=1 // pred_check
      _
    $region11: #{tpu_custom_call.1} parent=1 // pred_check_branch
      %14 = sbr.rel (0) target = $region13
    $region12: #{tpu_custom_call.1} parent=1 // pred_region
      _
    $region13: #{tpu_custom_call.1} parent=1 // pred_fallthru
      _
    %v15 = vld [vmem:[%s0] sm:$0xff]
    %v16 = vld [vmem:[%s0 + $0x8] sm:$0xff]
    %v17 = vld [vmem:[%s1] sm:$0xff]
    %v18 = vld [vmem:[%s2] sm:$0x1]
    %v20 = vlaneseq
    %v21 = vshrl.u32 %v20, 7
    %v22 = vsub.s32 0, %v21
    %v23 = vrot.slane %v18, %v22
    %vm25 = vcmask 64512
    %v27 = vsel %vm25, %v15, 0
    %v30 = vsel %vm25, %v16, 0
    %32 = vmatprep.subr.mxu0 0.0
    %33 = vmatpush1.msra.mxu0 0.0
    %34 = vmatprep.subr.mxu0 0.0
    %35 = vmatpush1.msra.mxu0 0.0
    %36 = vmatprep.subr.mxu0 0.0
    %37 = vmatpush1.msra.mxu0 0.0
    %38 = vmatprep.subr.mxu0 0.0
    %39 = vmatpush1.msra.mxu0 0.0
    %40 = vmatprep.subr.mxu0 0.0
    %41 = vmatpush1.msra.mxu0 0.0
    %42 = vmatprep.subr.mxu0 0.0
    %43 = vmatpush1.msra.mxu0 0.0
    %44 = vmatprep.subr.mxu0 0.0
    %45 = vmatpush1.msra.mxu0 0.0
    %46 = vmatprep.subr.mxu0 0.0
    %47 = vmatpush1.msra.mxu0 0.0
    %48 = vmatprep.subr.mxu0 0.0
    %49 = vmatpush1.msra.mxu0 0.0
    %50 = vmatprep.subr.mxu0 0.0
    %51 = vmatpush1.msra.mxu0 0.0
    %52 = vmatprep.subr.mxu0 0.0
    %53 = vmatpush1.msra.mxu0 0.0
    %54 = vmatprep.subr.mxu0 0.0
    %55 = vmatpush1.msra.mxu0 0.0
    %56 = vmatprep.subr.mxu0 0.0
    %57 = vmatpush1.msra.mxu0 0.0
    %58 = vmatprep.subr.mxu0 0.0
    %59 = vmatpush1.msra.mxu0 0.0
    %60 = vmatprep.subr.mxu0 0.0
    %61 = vmatpush1.msra.mxu0 0.0
    %62 = vmatprep.subr.mxu0 0.0
    %63 = vmatpush1.msra.mxu0 %v17
    %64 = vmatprep.subr.mxu0 0.0
    %65 = vmatpush2.msra.mxu0 0.0
    %66 = vmatprep.subr.mxu0 0.0
    %67 = vmatpush2.msra.mxu0 0.0
    %68 = vmatprep.subr.mxu0 0.0
    %69 = vmatpush2.msra.mxu0 0.0
    %70 = vmatprep.subr.mxu0 0.0
    %71 = vmatpush2.msra.mxu0 0.0
    %72 = vmatprep.subr.mxu0 0.0
    %73 = vmatpush2.msra.mxu0 0.0
    %74 = vmatprep.subr.mxu0 0.0
    %75 = vmatpush2.msra.mxu0 0.0
    %76 = vmatprep.subr.mxu0 0.0
    %77 = vmatpush2.msra.mxu0 0.0
    %78 = vmatprep.subr.mxu0 0.0
    %79 = vmatpush2.msra.mxu0 0.0
    %80 = vmatprep.subr.mxu0 0.0
    %81 = vmatpush2.msra.mxu0 0.0
    %82 = vmatprep.subr.mxu0 0.0
    %83 = vmatpush2.msra.mxu0 0.0
    %84 = vmatprep.subr.mxu0 0.0
    %85 = vmatpush2.msra.mxu0 0.0
    %86 = vmatprep.subr.mxu0 0.0
    %87 = vmatpush2.msra.mxu0 0.0
    %88 = vmatprep.subr.mxu0 0.0
    %89 = vmatpush2.msra.mxu0 0.0
    %90 = vmatprep.subr.mxu0 0.0
    %91 = vmatpush2.msra.mxu0 0.0
    %92 = vmatprep.subr.mxu0 0.0
    %93 = vmatpush2.msra.mxu0 0.0
    %94 = vmatprep.subr.mxu0 0.0
    %95 = vmatpush2.msra.mxu0 0.0
    %96 = vmatprep.mubr.f32.mxu0 0.0
    %97 = vmatmul.mubr.f32.gmra.mxu0 %v27
    %v98 = vpop.f32.mrf.mxu0
    %v99 = vadd.f32 %v23, %v98
    %v100 = vpop.f32.mrf.mxu0
    %101 = vmatprep.mubr.f32.mxu0 0.0
    %102 = vmatmul.mubr.f32.gmra.mxu0 %v30
    %v103 = vpop.f32.mrf.mxu0
    %v104 = vadd.f32 %v23, %v103
    %v105 = vpop.f32.mrf.mxu0
    %106 = vdwg.mxu0
    %vm107 = vcmask 130048
    %108 = vst.msk [vmem:[#allocation2] sm:$0xff] %vm107, %v99
    %109 = vst.msk [vmem:[#allocation2 + $0x8] sm:$0xff] %vm107, %v104
    // Predicated region
    $region14: #{tpu_custom_call.1} parent=1 // pred_check
      _
    $region15: #{tpu_custom_call.1} parent=1 // pred_check_branch
      %111 = sbr.rel (0) target = $region17
    $region16: #{tpu_custom_call.1} parent=1 // pred_region
      %s113 = ssub.s32 256, 256
      %114 = vsyncadd [#allocation3], %s113
      %s115 = sshll.u32 [#allocation2], 4
      %s116 = int_to_ptr.vmem [resolvable:$true] %s115
      %121 = dma.vmem_to_hbm [thread:$0]  %s116, 256, %s3, [#allocation3], 128, 128, 8
    $region17: #{tpu_custom_call.1} parent=1 // pred_fallthru
      _
    // Predicated region
    $region18: #{tpu_custom_call.1} parent=1 // pred_check
      _
    $region19: #{tpu_custom_call.1} parent=1 // pred_check_branch
      %123 = sbr.rel (0) target = $region21
    $region20: #{tpu_custom_call.1} parent=1 // pred_region
      %124 = dma.done [#allocation3], 256
    $region21: #{tpu_custom_call.1} parent=1 // pred_fallthru
      _
    %125 = vsyncpa [#allocation3], 1

</llo_original>
